<compile_context>
chip_gen: v7x
topology: tpu7x:2x2x1
jax: 0.10.0
libtpu: 0.0.40
codegen_flags: <defaults>
</compile_context>

<pallas_src>
import functools

import jax
import jax.numpy as jnp
from jax.experimental import pallas as pl
from jax.experimental.pallas import tpu as pltpu


def _round_up(x, n):
    return ((x + n - 1) // n) * n


def _lora_lin_kernel(x_ref, w1t_ref, w2t_ref, b_ref, o_ref):
    # x_ref:   (tm, in_features)
    # w1t_ref: (in_features, rank)
    # w2t_ref: (rank, tn)
    # b_ref:   (1, tn)
    # o_ref:   (tm, tn)
    t = jnp.dot(x_ref[...], w1t_ref[...], preferred_element_type=jnp.float32)
    # Feed the second MXU pass operands in the model compute dtype (no-op for
    # f32, halves operand width + native MXU rate for bf16 models); keep f32
    # accumulation.
    t = t.astype(x_ref.dtype)
    y = jnp.dot(t, w2t_ref[...], preferred_element_type=jnp.float32)
    y = y + b_ref[...].astype(jnp.float32)  # broadcast (1, tn) over rows (VPU, free)
    o_ref[...] = y.astype(o_ref.dtype)


@functools.partial(jax.jit, static_argnames=("tile_m", "tile_n"))
def lora_lin(x, w1, w2, bias=None, *, tile_m=256, tile_n=512):
    """LoRaLin forward.

    x:    (..., in_features)
    w1:   (rank, in_features)   -- torch nn.Linear(in, rank).weight
    w2:   (out_features, rank)  -- torch nn.Linear(rank, out).weight
    bias: (out_features,) or None -- torch nn.Linear(rank, out).bias
    returns (..., out_features)
    """
    rank, in_features = w1.shape
    out_features = w2.shape[0]

    lead_shape = x.shape[:-1]
    m = 1
    for d in lead_shape:
        m *= d
    x2d = x.reshape(m, in_features)

    # ---- Row (M) tiling: pad M to a multiple of the tile instead of asserting.
    tile_m = max(8, _round_up(tile_m, 8))
    tm = min(tile_m, _round_up(m, 8))
    m_pad = _round_up(m, tm)
    if m_pad != m:
        x2d = jnp.pad(x2d, ((0, m_pad - m), (0, 0)))

    # ---- Column (N) tiling: tile_n must be a multiple of 128 that divides
    # out_features (lane-dense unmasked stores); otherwise fall back to the
    # full extent (block == full array dim also satisfies the layout rule).
    if out_features % 128 == 0 and out_features > tile_n:
        tn = max(128, (min(tile_n, out_features) // 128) * 128)
        while out_features % tn != 0:
            tn -= 128
    else:
        tn = out_features

    w1t = w1.T                                  # (in_features, rank)
    w2t = w2.T                                  # (rank, out_features)
    if bias is None:
        b2d = jnp.zeros((1, out_features), dtype=x.dtype)
    else:
        b2d = bias.reshape(1, out_features)

    grid = (m_pad // tm, out_features // tn)

    # ---- VMEM budget derived from actual tile footprint (+50% headroom),
    # clamped so it stays valid on the smallest-VMEM generation (v7x 64 MiB).
    db = jnp.dtype(x.dtype).itemsize
    vmem_bytes = (
        2 * tm * in_features * db        # x tile, double-buffered
        + 2 * tm * tn * db               # out tile, double-buffered
        + 2 * in_features * rank * db    # w1t (resident)
        + 2 * rank * tn * db             # w2t
        + 2 * tn * db                    # bias
        + tm * tn * 4                    # f32 accumulator temporaries
        + tm * rank * 4
    )
    vmem_limit = int(vmem_bytes * 1.5) + (1 << 20)
    vmem_limit = max(16 * 1024 * 1024, min(vmem_limit, 64 * 1024 * 1024))

    out = pl.pallas_call(
        _lora_lin_kernel,
        out_shape=jax.ShapeDtypeStruct((m_pad, out_features), x.dtype),
        grid_spec=pltpu.PrefetchScalarGridSpec(
            num_scalar_prefetch=0,
            grid=grid,
            in_specs=[
                pl.BlockSpec((tm, in_features), lambda i, j: (i, 0)),
                pl.BlockSpec((in_features, rank), lambda i, j: (0, 0)),
                pl.BlockSpec((rank, tn), lambda i, j: (0, j)),
                pl.BlockSpec((1, tn), lambda i, j: (0, j)),
            ],
            out_specs=pl.BlockSpec((tm, tn), lambda i, j: (i, j)),
        ),
        compiler_params=pltpu.CompilerParams(
            dimension_semantics=("parallel", "parallel"),
            vmem_limit_bytes=vmem_limit,
        ),
    )(x2d, w1t, w2t, b2d)

    if m_pad != m:
        out = out[:m]
    return out.reshape(*lead_shape, out_features)


if __name__ == "__main__":
    # Small shapes consistent with the module: batch=2, seq=8, hidden=32.
    batch, seq = 2, 8
    in_features, rank, out_features = 32, 8, 64

    key = jax.random.PRNGKey(0)
    kx, kw1, kw2, kb = jax.random.split(key, 4)

    x = jax.random.normal(kx, (batch, seq, in_features), dtype=jnp.float32)
    # Deterministic synthetic parameters (same shapes as the torch module).
    w1 = jax.random.normal(kw1, (rank, in_features), dtype=jnp.float32) * 0.1
    w2 = jax.random.normal(kw2, (out_features, rank), dtype=jnp.float32) * 0.1
    bias = jax.random.normal(kb, (out_features,), dtype=jnp.float32) * 0.1

    y = lora_lin(x, w1, w2, bias)
    y = jax.block_until_ready(y)

    # Pure-JAX reference check.
    ref = x @ w1.T @ w2.T + bias
    assert y.shape == (batch, seq, out_features)
    assert jnp.allclose(y, ref, atol=1e-5, rtol=1e-5)

    # Also exercise the tiled path (M padded, multi-step grid, bf16 intermediate).
    xb = jax.random.normal(kx, (3, 100, in_features), dtype=jnp.float32)
    yb = jax.block_until_ready(lora_lin(xb, w1, w2, bias, tile_m=64, tile_n=64))
    refb = xb @ w1.T @ w2.T + bias
    assert yb.shape == (3, 100, out_features)
    assert jnp.allclose(yb, refb, atol=1e-5, rtol=1e-5)

    print("KERNEL_OK")
</pallas_src>

<mosaic_0001>
module attributes {stable_mosaic.version = 11 : i64} {
  func.func @_lora_lin_kernel(%arg0: i32, %arg1: i32, %arg2: memref<16x32xf32, #tpu.memory_space<vmem>>, %arg3: memref<32x8xf32, #tpu.memory_space<vmem>>, %arg4: memref<8x64xf32, #tpu.memory_space<vmem>>, %arg5: memref<1x64xf32, #tpu.memory_space<vmem>>, %arg6: memref<16x64xf32, #tpu.memory_space<vmem>>) attributes {dimension_semantics = [#tpu.dimension_semantics<parallel>, #tpu.dimension_semantics<parallel>], iteration_bounds = array<i64: 1, 1>, scalar_prefetch = 0 : i64, scratch_operands = 0 : i64, tpu.core_type = #tpu.core_type<tc>, window_params = [{transform_indices = @transform_0, window_bounds = array<i64: 16, 32>}, {pipeline_mode = #tpu.pipeline_mode<synchronous>, transform_indices = @transform_1, window_bounds = array<i64: 32, 8>}, {transform_indices = @transform_2, window_bounds = array<i64: 8, 64>}, {transform_indices = @transform_3, window_bounds = array<i64: 1, 64>}, {transform_indices = @transform_4, window_bounds = array<i64: 16, 64>}]} {
    %c0 = arith.constant 0 : index
    %c0_0 = arith.constant 0 : index
    %0 = vector.load %arg2[%c0, %c0_0] : memref<16x32xf32, #tpu.memory_space<vmem>>, vector<16x32xf32>
    %c0_1 = arith.constant 0 : index
    %c0_2 = arith.constant 0 : index
    %1 = vector.load %arg3[%c0_1, %c0_2] : memref<32x8xf32, #tpu.memory_space<vmem>>, vector<32x8xf32>
    %cst = arith.constant dense<0.000000e+00> : vector<16x8xf32>
    %2 = tpu.matmul %0, %1, %cst {dimension_numbers = #tpu.dot_dimension_numbers<[1], [0], [0], [1], [0, 0, 1, 1], [], []>} : vector<16x32xf32>, vector<32x8xf32>, vector<16x8xf32> -> vector<16x8xf32>
    %c0_3 = arith.constant 0 : index
    %c0_4 = arith.constant 0 : index
    %3 = vector.load %arg4[%c0_3, %c0_4] : memref<8x64xf32, #tpu.memory_space<vmem>>, vector<8x64xf32>
    %cst_5 = arith.constant dense<0.000000e+00> : vector<16x64xf32>
    %4 = tpu.matmul %2, %3, %cst_5 {dimension_numbers = #tpu.dot_dimension_numbers<[1], [0], [0], [1], [0, 0, 1, 1], [], []>} : vector<16x8xf32>, vector<8x64xf32>, vector<16x64xf32> -> vector<16x64xf32>
    %c0_6 = arith.constant 0 : index
    %c0_7 = arith.constant 0 : index
    %5 = vector.load %arg5[%c0_6, %c0_7] : memref<1x64xf32, #tpu.memory_space<vmem>>, vector<1x64xf32>
    %6 = vector.broadcast %5 : vector<1x64xf32> to vector<16x64xf32>
    %7 = arith.addf %4, %6 : vector<16x64xf32>
    %c0_8 = arith.constant 0 : index
    %c0_9 = arith.constant 0 : index
    %8 = vector.load %arg6[%c0_8, %c0_9] : memref<16x64xf32, #tpu.memory_space<vmem>>, vector<16x64xf32>
    tpu.vector_store %arg6[%c0_8, %c0_9], %7 {strides = array<i32>} : memref<16x64xf32, #tpu.memory_space<vmem>>, vector<16x64xf32>,
    return
  }
  func.func @transform_0(%arg0: i32, %arg1: i32) -> (i32, i32) {
    %c0_i32 = arith.constant 0 : i32
    %c0_i32_0 = arith.constant 0 : i32
    return %arg0, %c0_i32 : i32, i32
  }
  func.func @transform_1(%arg0: i32, %arg1: i32) -> (i32, i32) {
    %c0_i32 = arith.constant 0 : i32
    %c0_i32_0 = arith.constant 0 : i32
    %c0_i32_1 = arith.constant 0 : i32
    return %c0_i32, %c0_i32_0 : i32, i32
  }
  func.func @transform_2(%arg0: i32, %arg1: i32) -> (i32, i32) {
    %c0_i32 = arith.constant 0 : i32
    %c0_i32_0 = arith.constant 0 : i32
    return %c0_i32, %arg1 : i32, i32
  }
  func.func @transform_3(%arg0: i32, %arg1: i32) -> (i32, i32) {
    %c0_i32 = arith.constant 0 : i32
    %c0_i32_0 = arith.constant 0 : i32
    return %c0_i32, %arg1 : i32, i32
  }
  func.func @transform_4(%arg0: i32, %arg1: i32) -> (i32, i32) {
    %c0_i32 = arith.constant 0 : i32
    return %arg0, %arg1 : i32, i32
  }
}

</mosaic_0001>

<llo_original>
// kernel: lora_lin.1
$region0: #{lora_lin.1}
  #allocation0 [shape = 'u32[]', space=smem, size = 0x4, offset = 0x4, fixed_abs, tag = 'smem constant byte address 0x4 - core index']
  #allocation1 [shape = 'u32[144,128]{1,0:T(1,128)}', space=vmem, size = 0x12000, scoped, tag = 'internal scratch']
  %s0 = inlined_call_operand.vmem [shape: f32[16,32], index: 0, kind: input, shape index: {}]
  %s1 = inlined_call_operand.vmem [shape: f32[32,8], index: 1, kind: input, shape index: {}]
  %s2 = inlined_call_operand.vmem [shape: f32[8,64], index: 2, kind: input, shape index: {}]
  %s3 = inlined_call_operand.vmem [shape: f32[1,64], index: 3, kind: input, shape index: {}]
  %s4 = inlined_call_operand.hbm [shape: f32[16,64], index: 4, kind: output, shape index: {}]
  %s5 = sld [smem:[#allocation0]]
  $region26: #{lora_lin.1} parent=0
    _
  %s7 = ssub.s32 1, %s5
  %s8 = scalar_select 0, %s7, %s5
  $region1: #{lora_lin.1} parent=0
    #allocation2 [shape = 'u8[8192]{0}', space=vmem, size = 0x2000, scoped, tag = 'output window, operand 0, single buffered']
    #allocation3 [shape = 's32[1]{0}', space=sflag, size = 0x4, scoped, tag = 'scoped memory for lora_lin.1']
    %9 = vsyncpa [#allocation3], 0
    // Predicated region
    $region2: #{lora_lin.1} parent=1 // pred_check
      _
    $region3: #{lora_lin.1} parent=1 // pred_check_branch
      %11 = sbr.rel (0) target = $region5
    $region4: #{lora_lin.1} parent=1 // pred_region
      _
    $region5: #{lora_lin.1} parent=1 // pred_fallthru
      _
    // Predicated region
    $region6: #{lora_lin.1} parent=1 // pred_check
      _
    $region7: #{lora_lin.1} parent=1 // pred_check_branch
      %13 = sbr.rel (0) target = $region9
    $region8: #{lora_lin.1} parent=1 // pred_region
      _
    $region9: #{lora_lin.1} parent=1 // pred_fallthru
      _
    // Predicated region
    $region10: #{lora_lin.1} parent=1 // pred_check
      _
    $region11: #{lora_lin.1} parent=1 // pred_check_branch
      %15 = sbr.rel (0) target = $region13
    $region12: #{lora_lin.1} parent=1 // pred_region
      _
    $region13: #{lora_lin.1} parent=1 // pred_fallthru
      _
    // Predicated region
    $region14: #{lora_lin.1} parent=1 // pred_check
      _
    $region15: #{lora_lin.1} parent=1 // pred_check_branch
      %17 = sbr.rel (0) target = $region17
    $region16: #{lora_lin.1} parent=1 // pred_region
      _
    $region17: #{lora_lin.1} parent=1 // pred_fallthru
      _
    %v18 = vld [vmem:[%s0] sm:$0xff]
    %v19 = vld [vmem:[%s0 + $0x8] sm:$0xff]
    %v20 = vld [vmem:[%s1] sm:$0xff]
    %v21 = vld [vmem:[%s1 + $0x8] sm:$0xff]
    %v22 = vld [vmem:[%s1 + $0x10] sm:$0xff]
    %v23 = vld [vmem:[%s1 + $0x18] sm:$0xff]
    %vm24 = vcmask 261120
    %v26 = vsel %vm24, %v18, 0
    %v29 = vsel %vm24, %v19, 0
    %31 = vmatprep.subr.mxu0 0.0
    %32 = vmatpush1.msra.mxu0 %v20
    %33 = vmatprep.subr.mxu0 0.0
    %34 = vmatpush1.msra.mxu0 %v21
    %35 = vmatprep.subr.mxu0 0.0
    %36 = vmatpush1.msra.mxu0 %v22
    %37 = vmatprep.subr.mxu0 0.0
    %38 = vmatpush1.msra.mxu0 %v23
    %39 = vmatprep.subr.mxu0 0.0
    %40 = vmatpush1.msra.mxu0 0.0
    %41 = vmatprep.subr.mxu0 0.0
    %42 = vmatpush1.msra.mxu0 0.0
    %43 = vmatprep.subr.mxu0 0.0
    %44 = vmatpush1.msra.mxu0 0.0
    %45 = vmatprep.subr.mxu0 0.0
    %46 = vmatpush1.msra.mxu0 0.0
    %47 = vmatprep.subr.mxu0 0.0
    %48 = vmatpush1.msra.mxu0 0.0
    %49 = vmatprep.subr.mxu0 0.0
    %50 = vmatpush1.msra.mxu0 0.0
    %51 = vmatprep.subr.mxu0 0.0
    %52 = vmatpush1.msra.mxu0 0.0
    %53 = vmatprep.subr.mxu0 0.0
    %54 = vmatpush1.msra.mxu0 0.0
    %55 = vmatprep.subr.mxu0 0.0
    %56 = vmatpush1.msra.mxu0 0.0
    %57 = vmatprep.subr.mxu0 0.0
    %58 = vmatpush1.msra.mxu0 0.0
    %59 = vmatprep.subr.mxu0 0.0
    %60 = vmatpush1.msra.mxu0 0.0
    %61 = vmatprep.subr.mxu0 0.0
    %62 = vmatpush1.msra.mxu0 0.0
    %63 = vmatprep.subr.mxu0 0.0
    %64 = vmatpush1.msra.mxu0 0.0
    %65 = vmatprep.subr.mxu0 0.0
    %66 = vmatpush1.msra.mxu0 0.0
    %67 = vmatprep.subr.mxu0 0.0
    %68 = vmatpush1.msra.mxu0 0.0
    %69 = vmatprep.subr.mxu0 0.0
    %70 = vmatpush1.msra.mxu0 0.0
    %71 = vmatprep.subr.mxu0 0.0
    %72 = vmatpush1.msra.mxu0 0.0
    %73 = vmatprep.subr.mxu0 0.0
    %74 = vmatpush1.msra.mxu0 0.0
    %75 = vmatprep.subr.mxu0 0.0
    %76 = vmatpush1.msra.mxu0 0.0
    %77 = vmatprep.subr.mxu0 0.0
    %78 = vmatpush1.msra.mxu0 0.0
    %79 = vmatprep.subr.mxu0 0.0
    %80 = vmatpush1.msra.mxu0 0.0
    %81 = vmatprep.subr.mxu0 0.0
    %82 = vmatpush1.msra.mxu0 0.0
    %83 = vmatprep.subr.mxu0 0.0
    %84 = vmatpush1.msra.mxu0 0.0
    %85 = vmatprep.subr.mxu0 0.0
    %86 = vmatpush1.msra.mxu0 0.0
    %87 = vmatprep.subr.mxu0 0.0
    %88 = vmatpush1.msra.mxu0 0.0
    %89 = vmatprep.subr.mxu0 0.0
    %90 = vmatpush1.msra.mxu0 0.0
    %91 = vmatprep.subr.mxu0 0.0
    %92 = vmatpush1.msra.mxu0 0.0
    %93 = vmatprep.subr.mxu0 0.0
    %94 = vmatpush1.msra.mxu0 0.0
    %95 = vmatprep.mubr.f32.mxu0 0.0
    %96 = vmatmul.mubr.f32.gmra.mrb[0].mxu0 %v26
    %v97 = vpop.f32.mrb[0].mxu0
    %v98 = vadd.f32 0.0, %v97
    %v99 = vpop.f32.mrb[0].mxu0
    %100 = vmatprep.mubr.f32.mxu0 0.0
    %101 = vmatmul.mubr.f32.gmra.mrb[0].mxu0 %v29
    %v102 = vpop.f32.mrb[0].mxu0
    %v103 = vadd.f32 0.0, %v102
    %v104 = vpop.f32.mrb[0].mxu0
    %105 = vdwg.mxu0
    %v106 = vld [vmem:[%s2] sm:$0xff]
    %v107 = vld [vmem:[%s3] sm:$0x1]
    %v109 = vlaneseq
    %v110 = vshrl.u32 %v109, 7
    %v111 = vsub.s32 0, %v110
    %v112 = vrot.slane %v107, %v111
    %vm114 = vcmask 64512
    %v116 = vsel %vm114, %v98, 0
    %v119 = vsel %vm114, %v103, 0
    %121 = vmatprep.subr.mxu0 0.0
    %122 = vmatpush1.msra.mxu0 %v106
    %123 = vmatprep.subr.mxu0 0.0
    %124 = vmatpush1.msra.mxu0 0.0
    %125 = vmatprep.subr.mxu0 0.0
    %126 = vmatpush1.msra.mxu0 0.0
    %127 = vmatprep.subr.mxu0 0.0
    %128 = vmatpush1.msra.mxu0 0.0
    %129 = vmatprep.subr.mxu0 0.0
    %130 = vmatpush1.msra.mxu0 0.0
    %131 = vmatprep.subr.mxu0 0.0
    %132 = vmatpush1.msra.mxu0 0.0
    %133 = vmatprep.subr.mxu0 0.0
    %134 = vmatpush1.msra.mxu0 0.0
    %135 = vmatprep.subr.mxu0 0.0
    %136 = vmatpush1.msra.mxu0 0.0
    %137 = vmatprep.subr.mxu0 0.0
    %138 = vmatpush1.msra.mxu0 0.0
    %139 = vmatprep.subr.mxu0 0.0
    %140 = vmatpush1.msra.mxu0 0.0
    %141 = vmatprep.subr.mxu0 0.0
    %142 = vmatpush1.msra.mxu0 0.0
    %143 = vmatprep.subr.mxu0 0.0
    %144 = vmatpush1.msra.mxu0 0.0
    %145 = vmatprep.subr.mxu0 0.0
    %146 = vmatpush1.msra.mxu0 0.0
    %147 = vmatprep.subr.mxu0 0.0
    %148 = vmatpush1.msra.mxu0 0.0
    %149 = vmatprep.subr.mxu0 0.0
    %150 = vmatpush1.msra.mxu0 0.0
    %151 = vmatprep.subr.mxu0 0.0
    %152 = vmatpush1.msra.mxu0 0.0
    %153 = vmatprep.subr.mxu0 0.0
    %154 = vmatpush1.msra.mxu0 0.0
    %155 = vmatprep.subr.mxu0 0.0
    %156 = vmatpush1.msra.mxu0 0.0
    %157 = vmatprep.subr.mxu0 0.0
    %158 = vmatpush1.msra.mxu0 0.0
    %159 = vmatprep.subr.mxu0 0.0
    %160 = vmatpush1.msra.mxu0 0.0
    %161 = vmatprep.subr.mxu0 0.0
    %162 = vmatpush1.msra.mxu0 0.0
    %163 = vmatprep.subr.mxu0 0.0
    %164 = vmatpush1.msra.mxu0 0.0
    %165 = vmatprep.subr.mxu0 0.0
    %166 = vmatpush1.msra.mxu0 0.0
    %167 = vmatprep.subr.mxu0 0.0
    %168 = vmatpush1.msra.mxu0 0.0
    %169 = vmatprep.subr.mxu0 0.0
    %170 = vmatpush1.msra.mxu0 0.0
    %171 = vmatprep.subr.mxu0 0.0
    %172 = vmatpush1.msra.mxu0 0.0
    %173 = vmatprep.subr.mxu0 0.0
    %174 = vmatpush1.msra.mxu0 0.0
    %175 = vmatprep.subr.mxu0 0.0
    %176 = vmatpush1.msra.mxu0 0.0
    %177 = vmatprep.subr.mxu0 0.0
    %178 = vmatpush1.msra.mxu0 0.0
    %179 = vmatprep.subr.mxu0 0.0
    %180 = vmatpush1.msra.mxu0 0.0
    %181 = vmatprep.subr.mxu0 0.0
    %182 = vmatpush1.msra.mxu0 0.0
    %183 = vmatprep.subr.mxu0 0.0
    %184 = vmatpush1.msra.mxu0 0.0
    %185 = vmatprep.mubr.f32.mxu0 0.0
    %186 = vmatmul.mubr.f32.gmra.mrb[0].mxu0 %v116
    %v187 = vpop.f32.mrb[0].mxu0
    %v188 = vadd.f32 %v112, %v187
    %v189 = vpop.f32.mrb[0].mxu0
    %190 = vmatprep.mubr.f32.mxu0 0.0
    %191 = vmatmul.mubr.f32.gmra.mrb[0].mxu0 %v119
    %v192 = vpop.f32.mrb[0].mxu0
    %v193 = vadd.f32 %v112, %v192
    %v194 = vpop.f32.mrb[0].mxu0
    %195 = vdwg.mxu0
    %vm196 = vcmask 523264
    %197 = vst.msk [vmem:[#allocation2] sm:$0xff] %vm196, %v188
    %198 = vst.msk [vmem:[#allocation2 + $0x8] sm:$0xff] %vm196, %v193
    // Predicated region
    $region18: #{lora_lin.1} parent=1 // pred_check
      _
    $region19: #{lora_lin.1} parent=1 // pred_check_branch
      %200 = sbr.rel (0) target = $region21
    $region20: #{lora_lin.1} parent=1 // pred_region
      %s202 = ssub.s32 256, 256
      %203 = vsyncadd [#allocation3], %s202
      %s204 = sshll.u32 [#allocation2], 4
      %s205 = int_to_ptr.vmem [resolvable:$true] %s204
      %210 = dma.vmem_to_hbm [thread:$0]  %s205, 256, %s4, [#allocation3], 128, 128, 8
    $region21: #{lora_lin.1} parent=1 // pred_fallthru
      _
    // Predicated region
    $region22: #{lora_lin.1} parent=1 // pred_check
      _
    $region23: #{lora_lin.1} parent=1 // pred_check_branch
      %212 = sbr.rel (0) target = $region25
    $region24: #{lora_lin.1} parent=1 // pred_region
      %213 = dma.done [#allocation3], 256
    $region25: #{lora_lin.1} parent=1 // pred_fallthru
      _
    %214 = vsyncpa [#allocation3], 1

</llo_original>
